<compile_context>
chip_gen: v7x
topology: tpu7x:2x2x1
jax: 0.10.0
libtpu: 0.0.40
codegen_flags: <defaults>
</compile_context>

<pallas_src>
import jax
import jax.numpy as jnp
import numpy as np
from jax import lax
from jax.experimental import pallas as pl
from jax.experimental.pallas import tpu as pltpu

_LANES = 128
_SUBLANES = 8
# ~8 MiB per block; 4 live buffers (2 in + 2 out) = 32 MiB, under the explicit
# VMEM limit below on every generation (v5e/v6e 128 MiB, v7x 64 MiB physical).
_TARGET_BLOCK_BYTES = 8 * 1024 * 1024
_VMEM_LIMIT_BYTES = 40 * 1024 * 1024
# Below this the fixed pallas_call overhead dominates a pure copy -> skip.
_MIN_PALLAS_BYTES = 1 << 20


def _identity_kernel(x_ref, o_ref):
    # Pure pass-through of the current tile.
    o_ref[...] = x_ref[...]


def _round_up(n, m):
    return ((n + m - 1) // m) * m


def _pallas_copy_2d(x2, tb):
    """Row-tiled VMEM copy of a 2-D array (lanes = last dim)."""
    rows, lanes = x2.shape
    grid = (pl.cdiv(rows, tb),)
    return pl.pallas_call(
        _identity_kernel,
        out_shape=jax.ShapeDtypeStruct((rows, lanes), x2.dtype),
        grid=grid,
        in_specs=[pl.BlockSpec((tb, lanes), lambda i: (i, 0))],
        out_specs=pl.BlockSpec((tb, lanes), lambda i: (i, 0)),
        compiler_params=pltpu.CompilerParams(
            # Single data-parallel axis: shards across v7x's 2 TensorCores.
            dimension_semantics=("parallel",),
            vmem_limit_bytes=_VMEM_LIMIT_BYTES,
        ),
    )(x2)


def _pallas_identity_copy_impl(x):
    """Explicit Pallas copy of `x` (values unchanged, new buffer)."""
    orig_shape = x.shape
    total = int(x.size)
    itemsize = x.dtype.itemsize

    if total % (_SUBLANES * _LANES) == 0:
        # Lane-dense view: last dim = 128, rows a multiple of 8.
        lanes = _LANES
    elif x.ndim >= 2:
        # Fallback layout: keep the original last dim (may be < 128).
        lanes = orig_shape[-1]
    else:
        # Odd 0-D / 1-D shapes: one whole-array block (no grid, no tiling).
        return pl.pallas_call(
            _identity_kernel,
            out_shape=jax.ShapeDtypeStruct(orig_shape, x.dtype),
        )(x)

    rows = total // lanes
    x2 = x.reshape(rows, lanes)

    # Row tile sized to ~_TARGET_BLOCK_BYTES, rounded down to 8 sublanes.
    target_rows = max(
        _SUBLANES,
        (_TARGET_BLOCK_BYTES // max(1, lanes * itemsize))
        // _SUBLANES * _SUBLANES,
    )
    tb = rows if rows <= target_rows else target_rows

    # If everything fits one block but the array is splittable, force >= 2
    # grid steps so the parallel axis can be sharded across 2 TCs (v7x).
    if tb == rows and rows >= 2 * _SUBLANES:
        tb = _round_up(pl.cdiv(rows, 2), _SUBLANES)

    # Block row dim must be a multiple of 8 or equal the full extent.
    if tb != rows and tb % _SUBLANES != 0:
        tb = rows

    out2 = _pallas_copy_2d(x2, tb)
    return out2.reshape(orig_shape)


@jax.custom_vjp
def _pallas_identity(x):
    return _pallas_identity_copy_impl(x)


def _pallas_identity_fwd(x):
    return _pallas_identity_copy_impl(x), None


def _pallas_identity_bwd(_, g):
    return (g,)


_pallas_identity.defvjp(_pallas_identity_fwd, _pallas_identity_bwd)


def identity_encoder_forward(obs, detach=False, use_pallas=False,
                             min_pallas_bytes=_MIN_PALLAS_BYTES):
    """JAX/Pallas mirror of IdentityEncoder.forward.

    `detach=True` maps to lax.stop_gradient (parity with PyTorch .detach()).
    The Pallas copy is only taken when `use_pallas=True` AND the array is at
    least `min_pallas_bytes` — otherwise the identity is returned directly.
    """
    if detach:
        obs = lax.stop_gradient(obs)
    if not use_pallas:
        return obs
    nbytes = int(obs.size) * obs.dtype.itemsize
    if nbytes == 0 or nbytes < min_pallas_bytes:
        return obs
    return _pallas_identity(obs)


class IdentityEncoderJAX:
    """JAX/Pallas mirror of the PyTorch IdentityEncoder (no parameters)."""

    def __init__(self, obs_shape, feature_dim, num_layers, num_filters, *args,
                 use_pallas=False, min_pallas_bytes=_MIN_PALLAS_BYTES):
        assert len(obs_shape) == 1
        self.feature_dim = obs_shape[0]
        self.use_pallas = use_pallas
        self.min_pallas_bytes = min_pallas_bytes

    def __call__(self, obs, detach=False):
        return identity_encoder_forward(
            obs, detach=detach, use_pallas=self.use_pallas,
            min_pallas_bytes=self.min_pallas_bytes)

    def copy_conv_weights_from(self, source):
        pass  # no conv weights

    def log(self, L, step, log_freq):
        pass  # no logging state


if __name__ == "__main__":
    key = jax.random.PRNGKey(0)

    # Small shape consistent with the module: obs_shape = (32,), batch = 2.
    batch, feature_dim = 2, 32
    obs = jax.random.normal(key, (batch, feature_dim), dtype=jnp.float32)
    obs_host = np.asarray(obs)

    # min_pallas_bytes=0 forces the Pallas path even for this tiny demo shape
    # (single whole-array block); production default would just return obs.
    enc = IdentityEncoderJAX((feature_dim,), 50, 4, 32,
                             use_pallas=True, min_pallas_bytes=0)
    out = enc(obs, detach=True)
    out = jax.block_until_ready(out)
    assert out.shape == (batch, feature_dim) and out.dtype == jnp.float32
    assert np.array_equal(np.asarray(out), obs_host)

    # Lane-dense (rows, 128) tiled path with >= 2 parallel grid steps.
    big = jax.random.normal(jax.random.PRNGKey(0), (64, 256), dtype=jnp.float32)
    big_host = np.asarray(big)
    out_big = identity_encoder_forward(big, use_pallas=True, min_pallas_bytes=0)
    out_big = jax.block_until_ready(out_big)
    assert out_big.shape == (64, 256) and out_big.dtype == jnp.float32
    assert np.array_equal(np.asarray(out_big), big_host)

    # Gradient through the Pallas route is identity (custom_vjp).
    grad = jax.grad(lambda x: identity_encoder_forward(
        x, use_pallas=True, min_pallas_bytes=0).sum())(big)
    grad = jax.block_until_ready(grad)
    assert np.array_equal(np.asarray(grad), np.ones_like(big_host))

    # Default production path: no kernel at all.
    out_fast = identity_encoder_forward(big, detach=False, use_pallas=False)
    out_fast = jax.block_until_ready(out_fast)
    assert np.array_equal(np.asarray(out_fast), big_host)

    print("KERNEL_OK")
</pallas_src>

<mosaic_0001>
module attributes {stable_mosaic.version = 11 : i64} {
  func.func @_identity_kernel(%arg0: i32, %arg1: memref<2x32xf32, #tpu.memory_space<vmem>>, %arg2: memref<2x32xf32, #tpu.memory_space<vmem>>) attributes {dimension_semantics = [#tpu.dimension_semantics<parallel>], iteration_bounds = array<i64: 1>, scalar_prefetch = 0 : i64, scratch_operands = 0 : i64, tpu.core_type = #tpu.core_type<tc>, window_params = [{transform_indices = @transform_0, window_bounds = array<i64: 2, 32>}, {transform_indices = @transform_1, window_bounds = array<i64: 2, 32>}]} {
    %c0 = arith.constant 0 : index
    %c0_0 = arith.constant 0 : index
    %0 = vector.load %arg1[%c0, %c0_0] : memref<2x32xf32, #tpu.memory_space<vmem>>, vector<2x32xf32>
    %c0_1 = arith.constant 0 : index
    %c0_2 = arith.constant 0 : index
    %1 = vector.load %arg2[%c0_1, %c0_2] : memref<2x32xf32, #tpu.memory_space<vmem>>, vector<2x32xf32>
    tpu.vector_store %arg2[%c0_1, %c0_2], %0 {strides = array<i32>} : memref<2x32xf32, #tpu.memory_space<vmem>>, vector<2x32xf32>,
    return
  }
  func.func @transform_0(%arg0: i32) -> (i32, i32) {
    %c0_i32 = arith.constant 0 : i32
    %c0_i32_0 = arith.constant 0 : i32
    return %arg0, %c0_i32 : i32, i32
  }
  func.func @transform_1(%arg0: i32) -> (i32, i32) {
    %c0_i32 = arith.constant 0 : i32
    %c0_i32_0 = arith.constant 0 : i32
    return %arg0, %c0_i32 : i32, i32
  }
}

</mosaic_0001>

<llo_original>
// kernel: tpu_custom_call.1
$region0: #{tpu_custom_call.1}
  #allocation0 [shape = 'u32[]', space=smem, size = 0x4, offset = 0x4, fixed_abs, tag = 'smem constant byte address 0x4 - core index']
  #allocation1 [shape = 'u32[144,128]{1,0:T(1,128)}', space=vmem, size = 0x12000, scoped, tag = 'internal scratch']
  %s0 = inlined_call_operand.hbm [shape: f32[2,32], index: 0, kind: input, shape index: {}]
  %s1 = inlined_call_operand.hbm [shape: f32[2,32], index: 1, kind: output, shape index: {}]
  %s2 = sld [smem:[#allocation0]]
  $region18: #{tpu_custom_call.1} parent=0
    _
  %s4 = ssub.s32 1, %s2
  %s5 = scalar_select 0, %s4, %s2
  $region1: #{tpu_custom_call.1} parent=0
    #allocation2 [shape = 'u8[1024]{0}', space=vmem, size = 0x400, scoped, tag = 'input window, operand 0, single buffered']
    #allocation3 [shape = 's32[1]{0}', space=sflag, size = 0x4, scoped, tag = 'scoped memory for tpu_custom_call.1']
    #allocation4 [shape = 's32[1]{0}', space=sflag, size = 0x4, scoped, tag = 'scoped memory for tpu_custom_call.1']
    #allocation5 [shape = 'u8[1024]{0}', space=vmem, size = 0x400, scoped, tag = 'output window, operand 0, single buffered']
    %6 = vsyncpa [#allocation3], 0
    %7 = vsyncpa [#allocation4], 0
    // Predicated region
    $region2: #{tpu_custom_call.1} parent=1 // pred_check
      _
    $region3: #{tpu_custom_call.1} parent=1 // pred_check_branch
      %9 = sbr.rel (0) target = $region5
    $region4: #{tpu_custom_call.1} parent=1 // pred_region
      %s11 = ssub.s32 32, 32
      %12 = vsyncadd [#allocation3], %s11
      %s14 = sshll.u32 [#allocation2], 4
      %s15 = int_to_ptr.vmem [resolvable:$true] %s14
      %17 = dma.hbm_to_vmem [thread:$0]  %s0, 32, %s15, [#allocation3]
    $region5: #{tpu_custom_call.1} parent=1 // pred_fallthru
      _
    // Predicated region
    $region6: #{tpu_custom_call.1} parent=1 // pred_check
      _
    $region7: #{tpu_custom_call.1} parent=1 // pred_check_branch
      %19 = sbr.rel (0) target = $region9
    $region8: #{tpu_custom_call.1} parent=1 // pred_region
      %20 = dma.done [#allocation3], 32
    $region9: #{tpu_custom_call.1} parent=1 // pred_fallthru
      _
    %v21 = vld [vmem:[#allocation2] sm:$0x3]
    %vm22 = vcmask 254976
    %23 = vst.msk [vmem:[#allocation5] sm:$0x3] %vm22, %v21
    // Predicated region
    $region10: #{tpu_custom_call.1} parent=1 // pred_check
      _
    $region11: #{tpu_custom_call.1} parent=1 // pred_check_branch
      %25 = sbr.rel (0) target = $region13
    $region12: #{tpu_custom_call.1} parent=1 // pred_region
      %s27 = ssub.s32 32, 32
      %28 = vsyncadd [#allocation4], %s27
      %s30 = sshll.u32 [#allocation5], 4
      %s31 = int_to_ptr.vmem [resolvable:$true] %s30
      %33 = dma.vmem_to_hbm [thread:$0]  %s31, 32, %s1, [#allocation4]
    $region13: #{tpu_custom_call.1} parent=1 // pred_fallthru
      _
    // Predicated region
    $region14: #{tpu_custom_call.1} parent=1 // pred_check
      _
    $region15: #{tpu_custom_call.1} parent=1 // pred_check_branch
      %35 = sbr.rel (0) target = $region17
    $region16: #{tpu_custom_call.1} parent=1 // pred_region
      %36 = dma.done [#allocation4], 32
    $region17: #{tpu_custom_call.1} parent=1 // pred_fallthru
      _
    %37 = vsyncpa [#allocation3], 1
    %38 = vsyncpa [#allocation4], 1

</llo_original>
